<compile_context>
chip_gen: v7x
topology: tpu7x:2x2x1
jax: 0.10.0
libtpu: 0.0.40
codegen_flags: <defaults>
</compile_context>

<pallas_src>
import functools

import jax
import jax.numpy as jnp
from jax.experimental import pallas as pl
from jax.experimental.pallas import tpu as pltpu

LANE = 128
SUBLANE_BF16 = 16  # bf16 second-minor tiling


def _round_up(n, m):
    return ((n + m - 1) // m) * m


def _mlp_kernel(x_ref, w1_ref, b1_ref, w2_ref, b2_ref, w3_ref, b3_ref, o_ref,
                *, h1_rows, h2_rows):
    # x: (B, in_p) f32 -> bf16 to hit the native MXU path; accumulate in f32.
    x = x_ref[...].astype(jnp.bfloat16)

    # ---- fc1 + ReLU (weight-norm scale pre-folded into w1) ----------------
    h = jnp.dot(x, w1_ref[...], preferred_element_type=jnp.float32) + b1_ref[...]
    h = jnp.maximum(h, 0.0)
    # TODO(synk): nn.Dropout is identity in eval mode; training-mode random
    # masking (pltpu.prng_random_bits) is not implemented here.

    # ---- fc2 + ReLU: contract only over the first h1_rows lanes of h ------
    h2 = jnp.dot(h[:, :h1_rows].astype(jnp.bfloat16), w2_ref[...],
                 preferred_element_type=jnp.float32) + b2_ref[...]
    h2 = jnp.maximum(h2, 0.0)

    # ---- fc3 (logits) ------------------------------------------------------
    out = jnp.dot(h2[:, :h2_rows].astype(jnp.bfloat16), w3_ref[...],
                  preferred_element_type=jnp.float32) + b3_ref[...]
    o_ref[...] = out.astype(o_ref.dtype)


def prepare_params(params, in_dim, hid_dim, out_dim):
    """One-time layout prep.

    Folds the weight_norm(dim=None) scale g/||V||_F into each weight, then
    transposes to (fan_in, fan_out), zero-pads (rows -> multiple of 16 for
    bf16, cols -> 128 lanes) and casts to bf16.  Zero padding is numerically
    exact for this network (padded bias lanes are 0, ReLU(0)=0, padded
    contraction rows are 0)."""
    h1 = hid_dim // 2
    in_p = _round_up(in_dim, SUBLANE_BF16)
    h1_p = _round_up(h1, SUBLANE_BF16)
    hid_p = _round_up(hid_dim, SUBLANE_BF16)
    out_p = LANE  # lane-dense logits tile; wrapper slices back to out_dim

    def fold(v, g):
        # weight_norm(dim=None): W = g * V / ||V||_F  (same formula as reference)
        return (g / jnp.sqrt(jnp.sum(v * v))) * v

    def pad_wt(w, rows, cols):
        # w: (fan_out, fan_in) torch layout -> padded (rows, cols) bf16, transposed
        buf = jnp.zeros((rows, cols), jnp.float32)
        buf = buf.at[: w.shape[1], : w.shape[0]].set(w.T)
        return buf.astype(jnp.bfloat16)

    def pad_b(b, cols):
        bb = jnp.zeros((1, cols), jnp.float32)
        return bb.at[0, : b.shape[0]].set(b)

    w1 = fold(params["v1"], params["g1"])
    w2 = fold(params["v2"], params["g2"])
    w3 = fold(params["v3"], params["g3"])

    return dict(
        w1=pad_wt(w1, in_p, LANE),    # (in_p, 128)
        w2=pad_wt(w2, h1_p, LANE),    # (16, 128)
        w3=pad_wt(w3, hid_p, LANE),   # (32, 128)
        b1=pad_b(params["b1"], LANE),
        b2=pad_b(params["b2"], LANE),
        b3=pad_b(params["b3"], out_p),
    )


def my_classifier0_forward(x, prep, out_dim):
    """x: (B, in_dim) float32.  prep: output of prepare_params."""
    B, in_dim = x.shape
    in_p = prep["w1"].shape[0]
    if in_p != in_dim:  # pad contraction dim of x to the bf16 sublane multiple
        x = jnp.pad(x, ((0, 0), (0, in_p - in_dim)))
    h1_p = prep["w2"].shape[0]
    hid_p = prep["w3"].shape[0]
    out_p = prep["b3"].shape[1]

    vmem = pl.BlockSpec(memory_space=pltpu.MemorySpace.VMEM)
    kernel = functools.partial(_mlp_kernel, h1_rows=h1_p, h2_rows=hid_p)

    out_padded = pl.pallas_call(
        kernel,
        out_shape=jax.ShapeDtypeStruct((B, out_p), jnp.float32),
        in_specs=[vmem] * 7,   # x, w1, b1, w2, b2, w3, b3
        out_specs=vmem,
    )(x, prep["w1"], prep["b1"], prep["w2"], prep["b2"], prep["w3"], prep["b3"])
    return out_padded[:, :out_dim]


def init_params(key, in_dim, hid_dim, out_dim):
    """Deterministic synthetic parameters matching the module's shapes.

    weight_norm(dim=None) parametrizes each Linear weight as (v, g) with g a
    scalar; at PyTorch init g = ||v||_F so the effective weight equals v."""
    h1 = hid_dim // 2
    keys = jax.random.split(key, 6)

    def linear(kw, kb, fan_in, fan_out):
        bound = 1.0 / jnp.sqrt(fan_in)
        v = jax.random.uniform(kw, (fan_out, fan_in), jnp.float32, -bound, bound)
        b = jax.random.uniform(kb, (fan_out,), jnp.float32, -bound, bound)
        g = jnp.sqrt(jnp.sum(v * v))  # scalar, as in weight_norm(dim=None) init
        return v, g, b

    v1, g1, b1 = linear(keys[0], keys[1], in_dim, h1)
    v2, g2, b2 = linear(keys[2], keys[3], h1, hid_dim)
    v3, g3, b3 = linear(keys[4], keys[5], hid_dim, out_dim)
    return dict(v1=v1, g1=g1, b1=b1, v2=v2, g2=g2, b2=b2, v3=v3, g3=g3, b3=b3)


def reference_forward(x, params):
    def eff(v, g):  # weight_norm(dim=None): W = g * V / ||V||_F
        return g * v / jnp.sqrt(jnp.sum(v * v))

    w1 = eff(params["v1"], params["g1"])
    w2 = eff(params["v2"], params["g2"])
    w3 = eff(params["v3"], params["g3"])
    h = jnp.maximum(x @ w1.T + params["b1"], 0.0)
    h = jnp.maximum(h @ w2.T + params["b2"], 0.0)
    return h @ w3.T + params["b3"]


if __name__ == "__main__":
    in_dim, hid_dim, out_dim = 32, 32, 8
    batch = 8

    key = jax.random.PRNGKey(0)
    kx, kp = jax.random.split(key)
    x = jax.random.normal(kx, (batch, in_dim), jnp.float32)
    params = init_params(kp, in_dim, hid_dim, out_dim)

    prep = prepare_params(params, in_dim, hid_dim, out_dim)  # one-time layout prep
    logits = my_classifier0_forward(x, prep, out_dim)
    logits = jax.block_until_ready(logits)

    ref = reference_forward(x, params)  # f32 reference
    assert logits.shape == (batch, out_dim)
    # bf16 weights/activations on the MXU (f32 accumulate): relax tolerance
    # accordingly vs. the pure-f32 reference.
    assert jnp.allclose(logits, ref, atol=3e-2, rtol=3e-2)
    print("KERNEL_OK")
</pallas_src>

<mosaic_0001>
module attributes {stable_mosaic.version = 11 : i64} {
  func.func @_mlp_kernel(%arg0: memref<8x32xf32, #tpu.memory_space<vmem>>, %arg1: memref<32x128xbf16, #tpu.memory_space<vmem>>, %arg2: memref<1x128xf32, #tpu.memory_space<vmem>>, %arg3: memref<16x128xbf16, #tpu.memory_space<vmem>>, %arg4: memref<1x128xf32, #tpu.memory_space<vmem>>, %arg5: memref<32x128xbf16, #tpu.memory_space<vmem>>, %arg6: memref<1x128xf32, #tpu.memory_space<vmem>>, %arg7: memref<8x128xf32, #tpu.memory_space<vmem>>) attributes {dimension_semantics = [], scalar_prefetch = 0 : i64, scratch_operands = 0 : i64, tpu.core_type = #tpu.core_type<tc>} {
    %c0 = arith.constant 0 : index
    %c0_0 = arith.constant 0 : index
    %0 = vector.load %arg0[%c0, %c0_0] : memref<8x32xf32, #tpu.memory_space<vmem>>, vector<8x32xf32>
    %1 = arith.truncf %0 : vector<8x32xf32> to vector<8x32xbf16>
    %c0_1 = arith.constant 0 : index
    %c0_2 = arith.constant 0 : index
    %2 = vector.load %arg1[%c0_1, %c0_2] : memref<32x128xbf16, #tpu.memory_space<vmem>>, vector<32x128xbf16>
    %cst = arith.constant dense<0.000000e+00> : vector<8x128xf32>
    %3 = tpu.matmul %1, %2, %cst {dimension_numbers = #tpu.dot_dimension_numbers<[1], [0], [0], [1], [0, 0, 1, 1], [], []>} : vector<8x32xbf16>, vector<32x128xbf16>, vector<8x128xf32> -> vector<8x128xf32>
    %c0_3 = arith.constant 0 : index
    %c0_4 = arith.constant 0 : index
    %4 = vector.load %arg2[%c0_3, %c0_4] : memref<1x128xf32, #tpu.memory_space<vmem>>, vector<1x128xf32>
    %5 = vector.broadcast %4 : vector<1x128xf32> to vector<8x128xf32>
    %6 = arith.addf %3, %5 : vector<8x128xf32>
    %cst_5 = arith.constant 0.000000e+00 : f32
    %7 = vector.broadcast %cst_5 : f32 to vector<8x128xf32>
    %8 = arith.maximumf %6, %7 : vector<8x128xf32>
    %9 = vector.extract_strided_slice %8 {offsets = [0, 0], sizes = [8, 16], strides = [1, 1]} : vector<8x128xf32> to vector<8x16xf32>
    %10 = arith.truncf %9 : vector<8x16xf32> to vector<8x16xbf16>
    %c0_6 = arith.constant 0 : index
    %c0_7 = arith.constant 0 : index
    %11 = vector.load %arg3[%c0_6, %c0_7] : memref<16x128xbf16, #tpu.memory_space<vmem>>, vector<16x128xbf16>
    %cst_8 = arith.constant dense<0.000000e+00> : vector<8x128xf32>
    %12 = tpu.matmul %10, %11, %cst_8 {dimension_numbers = #tpu.dot_dimension_numbers<[1], [0], [0], [1], [0, 0, 1, 1], [], []>} : vector<8x16xbf16>, vector<16x128xbf16>, vector<8x128xf32> -> vector<8x128xf32>
    %c0_9 = arith.constant 0 : index
    %c0_10 = arith.constant 0 : index
    %13 = vector.load %arg4[%c0_9, %c0_10] : memref<1x128xf32, #tpu.memory_space<vmem>>, vector<1x128xf32>
    %14 = vector.broadcast %13 : vector<1x128xf32> to vector<8x128xf32>
    %15 = arith.addf %12, %14 : vector<8x128xf32>
    %cst_11 = arith.constant 0.000000e+00 : f32
    %16 = vector.broadcast %cst_11 : f32 to vector<8x128xf32>
    %17 = arith.maximumf %15, %16 : vector<8x128xf32>
    %18 = vector.extract_strided_slice %17 {offsets = [0, 0], sizes = [8, 32], strides = [1, 1]} : vector<8x128xf32> to vector<8x32xf32>
    %19 = arith.truncf %18 : vector<8x32xf32> to vector<8x32xbf16>
    %c0_12 = arith.constant 0 : index
    %c0_13 = arith.constant 0 : index
    %20 = vector.load %arg5[%c0_12, %c0_13] : memref<32x128xbf16, #tpu.memory_space<vmem>>, vector<32x128xbf16>
    %cst_14 = arith.constant dense<0.000000e+00> : vector<8x128xf32>
    %21 = tpu.matmul %19, %20, %cst_14 {dimension_numbers = #tpu.dot_dimension_numbers<[1], [0], [0], [1], [0, 0, 1, 1], [], []>} : vector<8x32xbf16>, vector<32x128xbf16>, vector<8x128xf32> -> vector<8x128xf32>
    %c0_15 = arith.constant 0 : index
    %c0_16 = arith.constant 0 : index
    %22 = vector.load %arg6[%c0_15, %c0_16] : memref<1x128xf32, #tpu.memory_space<vmem>>, vector<1x128xf32>
    %23 = vector.broadcast %22 : vector<1x128xf32> to vector<8x128xf32>
    %24 = arith.addf %21, %23 : vector<8x128xf32>
    %c0_17 = arith.constant 0 : index
    %c0_18 = arith.constant 0 : index
    %25 = vector.load %arg7[%c0_17, %c0_18] : memref<8x128xf32, #tpu.memory_space<vmem>>, vector<8x128xf32>
    tpu.vector_store %arg7[%c0_17, %c0_18], %24 {strides = array<i32>} : memref<8x128xf32, #tpu.memory_space<vmem>>, vector<8x128xf32>,
    return
  }
}

</mosaic_0001>

<llo_original>
// kernel: tpu_custom_call.1
$region0: #{tpu_custom_call.1}
  #allocation0 [shape = 'u32[]', space=smem, size = 0x4, offset = 0x4, fixed_abs, tag = 'smem constant byte address 0x4 - core index']
  #allocation1 [shape = 'u32[144,128]{1,0:T(1,128)}', space=vmem, size = 0x12000, scoped, tag = 'internal scratch']
  %s0 = inlined_call_operand.hbm [shape: f32[8,32], index: 0, kind: input, shape index: {}]
  %s1 = inlined_call_operand.hbm [shape: bf16[32,128], index: 1, kind: input, shape index: {}]
  %s2 = inlined_call_operand.vmem [shape: f32[1,128], index: 2, kind: input, shape index: {}]
  %s3 = inlined_call_operand.hbm [shape: bf16[16,128], index: 3, kind: input, shape index: {}]
  %s4 = inlined_call_operand.vmem [shape: f32[1,128], index: 4, kind: input, shape index: {}]
  %s5 = inlined_call_operand.vmem [shape: bf16[32,128], index: 5, kind: input, shape index: {}]
  %s6 = inlined_call_operand.vmem [shape: f32[1,128], index: 6, kind: input, shape index: {}]
  %s7 = inlined_call_operand.hbm [shape: f32[8,128], index: 7, kind: output, shape index: {}]
  %s8 = sld [smem:[#allocation0]]
  $region50: #{tpu_custom_call.1} parent=0
    _
  %s10 = ssub.s32 1, %s8
  %s11 = scalar_select 0, %s10, %s8
  $region1: #{tpu_custom_call.1} parent=0
    #allocation2 [shape = 'u8[4096]{0}', space=vmem, size = 0x1000, scoped, tag = 'input window, operand 0, single buffered']
    #allocation3 [shape = 's32[1]{0}', space=sflag, size = 0x4, scoped, tag = 'scoped memory for tpu_custom_call.1']
    #allocation4 [shape = 's32[1]{0}', space=sflag, size = 0x4, scoped, tag = 'scoped memory for tpu_custom_call.1']
    #allocation5 [shape = 'u8[8192]{0}', space=vmem, size = 0x2000, scoped, tag = 'input window, operand 1, single buffered']
    #allocation6 [shape = 's32[1]{0}', space=sflag, size = 0x4, scoped, tag = 'scoped memory for tpu_custom_call.1']
    #allocation7 [shape = 'u8[4096]{0}', space=vmem, size = 0x1000, scoped, tag = 'input window, operand 3, single buffered']
    #allocation8 [shape = 'u8[4096]{0}', space=vmem, size = 0x1000, scoped, tag = 'output window, operand 0, single buffered']
    %12 = vsyncpa [#allocation3], 0
    %13 = vsyncpa [#allocation6], 0
    %14 = vsyncpa [#allocation4], 0
    // Predicated region
    $region2: #{tpu_custom_call.1} parent=1 // pred_check
      _
    $region3: #{tpu_custom_call.1} parent=1 // pred_check_branch
      %16 = sbr.rel (0) target = $region5
    $region4: #{tpu_custom_call.1} parent=1 // pred_region
      %s18 = ssub.s32 128, 128
      %19 = vsyncadd [#allocation3], %s18
      %s21 = sshll.u32 [#allocation2], 4
      %s22 = int_to_ptr.vmem [resolvable:$true] %s21
      %24 = dma.hbm_to_vmem [thread:$0]  %s0, 128, %s22, [#allocation3]
    $region5: #{tpu_custom_call.1} parent=1 // pred_fallthru
      _
    // Predicated region
    $region6: #{tpu_custom_call.1} parent=1 // pred_check
      _
    $region7: #{tpu_custom_call.1} parent=1 // pred_check_branch
      %26 = sbr.rel (0) target = $region9
    $region8: #{tpu_custom_call.1} parent=1 // pred_region
      %s28 = ssub.s32 256, 256
      %29 = vsyncadd [#allocation6], %s28
      %s30 = sshll.u32 [#allocation5], 4
      %s31 = int_to_ptr.vmem [resolvable:$true] %s30
      %36 = dma.hbm_to_vmem [thread:$0]  %s1, 256, %s31, [#allocation6], 64, 64, 4
    $region9: #{tpu_custom_call.1} parent=1 // pred_fallthru
      _
    // Predicated region
    $region10: #{tpu_custom_call.1} parent=1 // pred_check
      _
    $region11: #{tpu_custom_call.1} parent=1 // pred_check_branch
      %38 = sbr.rel (0) target = $region13
    $region12: #{tpu_custom_call.1} parent=1 // pred_region
      _
    $region13: #{tpu_custom_call.1} parent=1 // pred_fallthru
      _
    // Predicated region
    $region14: #{tpu_custom_call.1} parent=1 // pred_check
      _
    $region15: #{tpu_custom_call.1} parent=1 // pred_check_branch
      %40 = sbr.rel (0) target = $region17
    $region16: #{tpu_custom_call.1} parent=1 // pred_region
      %s42 = ssub.s32 128, 128
      %43 = vsyncadd [#allocation6], %s42
      %s44 = sshll.u32 [#allocation7], 4
      %s45 = int_to_ptr.vmem [resolvable:$true] %s44
      %50 = dma.hbm_to_vmem [thread:$0]  %s3, 128, %s45, [#allocation6], 64, 64, 4
    $region17: #{tpu_custom_call.1} parent=1 // pred_fallthru
      _
    // Predicated region
    $region18: #{tpu_custom_call.1} parent=1 // pred_check
      _
    $region19: #{tpu_custom_call.1} parent=1 // pred_check_branch
      %52 = sbr.rel (0) target = $region21
    $region20: #{tpu_custom_call.1} parent=1 // pred_region
      _
    $region21: #{tpu_custom_call.1} parent=1 // pred_fallthru
      _
    // Predicated region
    $region22: #{tpu_custom_call.1} parent=1 // pred_check
      _
    $region23: #{tpu_custom_call.1} parent=1 // pred_check_branch
      %54 = sbr.rel (0) target = $region25
    $region24: #{tpu_custom_call.1} parent=1 // pred_region
      _
    $region25: #{tpu_custom_call.1} parent=1 // pred_fallthru
      _
    // Predicated region
    $region26: #{tpu_custom_call.1} parent=1 // pred_check
      _
    $region27: #{tpu_custom_call.1} parent=1 // pred_check_branch
      %56 = sbr.rel (0) target = $region29
    $region28: #{tpu_custom_call.1} parent=1 // pred_region
      _
    $region29: #{tpu_custom_call.1} parent=1 // pred_fallthru
      _
    // Predicated region
    $region30: #{tpu_custom_call.1} parent=1 // pred_check
      _
    $region31: #{tpu_custom_call.1} parent=1 // pred_check_branch
      %58 = sbr.rel (0) target = $region33
    $region32: #{tpu_custom_call.1} parent=1 // pred_region
      %59 = dma.done [#allocation3], 128
    $region33: #{tpu_custom_call.1} parent=1 // pred_fallthru
      _
    // Predicated region
    $region34: #{tpu_custom_call.1} parent=1 // pred_check
      _
    $region35: #{tpu_custom_call.1} parent=1 // pred_check_branch
      %61 = sbr.rel (0) target = $region37
    $region36: #{tpu_custom_call.1} parent=1 // pred_region
      %62 = dma.done [#allocation6], 256
    $region37: #{tpu_custom_call.1} parent=1 // pred_fallthru
      _
    // Predicated region
    $region38: #{tpu_custom_call.1} parent=1 // pred_check
      _
    $region39: #{tpu_custom_call.1} parent=1 // pred_check_branch
      %64 = sbr.rel (0) target = $region41
    $region40: #{tpu_custom_call.1} parent=1 // pred_region
      %65 = dma.done [#allocation6], 128
    $region41: #{tpu_custom_call.1} parent=1 // pred_fallthru
      _
    %v67 = vld [vmem:[#allocation2] sm:$0xff]
    %v68 = vpack.c.bf16 %v67, %v67
    %v69 = vld [vmem:[#allocation5] sm:$0xf]
    %v70 = vld [vmem:[#allocation5 + $0x4] sm:$0xf]
    %v71 = vld [vmem:[#allocation5 + $0x8] sm:$0xf]
    %v72 = vld [vmem:[#allocation5 + $0xc] sm:$0xf]
    %v73 = vld [vmem:[%s2] sm:$0x1]
    %v75 = vlaneseq
    %v76 = vshrl.u32 %v75, 7
    %v77 = vsub.s32 0, %v76
    %v78 = vrot.slane %v73, %v77
    %v84 = vunpack.c.l.b16 %v69
    %v85 = vunpack.c.l.b16 %v70
    %v86 = vunpack.c.l.b16 %v71
    %v87 = vunpack.c.l.b16 %v72
    %v88 = vpack.c.b16 %v85, %v84
    %v89 = vpack.c.b16 %v87, %v86
    %vm92 = vcmask 261120
    %v94 = vsel %vm92, %v68, 0
    %96 = vmatprep.subr.bf16.mxu0 0
    %97 = vmatpush1.bf16.msra.mxu0 %v88
    %98 = vmatprep.subr.bf16.mxu0 0
    %99 = vmatpush1.bf16.msra.mxu0 %v89
    %100 = vmatprep.subr.bf16.mxu0 0
    %101 = vmatpush1.bf16.msra.mxu0 0
    %102 = vmatprep.subr.bf16.mxu0 0
    %103 = vmatpush1.bf16.msra.mxu0 0
    %104 = vmatprep.subr.bf16.mxu0 0
    %105 = vmatpush1.bf16.msra.mxu0 0
    %106 = vmatprep.subr.bf16.mxu0 0
    %107 = vmatpush1.bf16.msra.mxu0 0
    %108 = vmatprep.subr.bf16.mxu0 0
    %109 = vmatpush1.bf16.msra.mxu0 0
    %110 = vmatprep.subr.bf16.mxu0 0
    %111 = vmatpush1.bf16.msra.mxu0 0
    %112 = vmatprep.subr.bf16.mxu0 0
    %113 = vmatpush1.bf16.msra.mxu0 0
    %114 = vmatprep.subr.bf16.mxu0 0
    %115 = vmatpush1.bf16.msra.mxu0 0
    %116 = vmatprep.subr.bf16.mxu0 0
    %117 = vmatpush1.bf16.msra.mxu0 0
    %118 = vmatprep.subr.bf16.mxu0 0
    %119 = vmatpush1.bf16.msra.mxu0 0
    %120 = vmatprep.subr.bf16.mxu0 0
    %121 = vmatpush1.bf16.msra.mxu0 0
    %122 = vmatprep.subr.bf16.mxu0 0
    %123 = vmatpush1.bf16.msra.mxu0 0
    %124 = vmatprep.subr.bf16.mxu0 0
    %125 = vmatpush1.bf16.msra.mxu0 0
    %126 = vmatprep.subr.bf16.mxu0 0
    %127 = vmatpush1.bf16.msra.mxu0 0
    %128 = vmatprep.mubr.bf16.mxu0 0
    %129 = vmatmul.mubr.bf16.gmra.mrb[0].mxu0 %v94
    %v130 = vpop.f32.mrb[0].mxu0
    %v131 = vadd.f32 %v78, %v130
    %v132 = vpop.f32.mrb[0].mxu0
    %v133 = vpop.f32.mrb[0].mxu0
    %v134 = vpop.f32.mrb[0].mxu0
    %135 = vdwg.mxu0
    %v136 = vmax.f32 %v131, 0.0
    %v137 = vpack.c.bf16 %v136, %v136
    %v138 = vld [vmem:[#allocation7] sm:$0xf]
    %v139 = vld [vmem:[#allocation7 + $0x4] sm:$0xf]
    %v140 = vld [vmem:[%s4] sm:$0x1]
    %v142 = vlaneseq
    %v143 = vshrl.u32 %v142, 7
    %v144 = vsub.s32 0, %v143
    %v145 = vrot.slane %v140, %v144
    %v149 = vunpack.c.l.b16 %v138
    %v150 = vunpack.c.l.b16 %v139
    %v151 = vpack.c.b16 %v150, %v149
    %vm153 = vcmask 130048
    %v155 = vsel %vm153, %v137, 0
    %157 = vmatprep.subr.bf16.mxu0 0
    %158 = vmatpush1.bf16.msra.mxu0 %v151
    %159 = vmatprep.subr.bf16.mxu0 0
    %160 = vmatpush1.bf16.msra.mxu0 0
    %161 = vmatprep.subr.bf16.mxu0 0
    %162 = vmatpush1.bf16.msra.mxu0 0
    %163 = vmatprep.subr.bf16.mxu0 0
    %164 = vmatpush1.bf16.msra.mxu0 0
    %165 = vmatprep.subr.bf16.mxu0 0
    %166 = vmatpush1.bf16.msra.mxu0 0
    %167 = vmatprep.subr.bf16.mxu0 0
    %168 = vmatpush1.bf16.msra.mxu0 0
    %169 = vmatprep.subr.bf16.mxu0 0
    %170 = vmatpush1.bf16.msra.mxu0 0
    %171 = vmatprep.subr.bf16.mxu0 0
    %172 = vmatpush1.bf16.msra.mxu0 0
    %173 = vmatprep.subr.bf16.mxu0 0
    %174 = vmatpush1.bf16.msra.mxu0 0
    %175 = vmatprep.subr.bf16.mxu0 0
    %176 = vmatpush1.bf16.msra.mxu0 0
    %177 = vmatprep.subr.bf16.mxu0 0
    %178 = vmatpush1.bf16.msra.mxu0 0
    %179 = vmatprep.subr.bf16.mxu0 0
    %180 = vmatpush1.bf16.msra.mxu0 0
    %181 = vmatprep.subr.bf16.mxu0 0
    %182 = vmatpush1.bf16.msra.mxu0 0
    %183 = vmatprep.subr.bf16.mxu0 0
    %184 = vmatpush1.bf16.msra.mxu0 0
    %185 = vmatprep.subr.bf16.mxu0 0
    %186 = vmatpush1.bf16.msra.mxu0 0
    %187 = vmatprep.subr.bf16.mxu0 0
    %188 = vmatpush1.bf16.msra.mxu0 0
    %189 = vmatprep.mubr.bf16.mxu0 0
    %190 = vmatmul.mubr.bf16.gmra.mrb[0].mxu0 %v155
    %v191 = vpop.f32.mrb[0].mxu0
    %v192 = vadd.f32 %v145, %v191
    %v193 = vpop.f32.mrb[0].mxu0
    %v194 = vpop.f32.mrb[0].mxu0
    %v195 = vpop.f32.mrb[0].mxu0
    %196 = vdwg.mxu0
    %v197 = vmax.f32 %v192, 0.0
    %v198 = vpack.c.bf16 %v197, %v197
    %v199 = vld [vmem:[%s5] sm:$0xf]
    %v200 = vld [vmem:[%s5 + $0x4] sm:$0xf]
    %v201 = vld [vmem:[%s5 + $0x8] sm:$0xf]
    %v202 = vld [vmem:[%s5 + $0xc] sm:$0xf]
    %v203 = vld [vmem:[%s6] sm:$0x1]
    %v205 = vlaneseq
    %v206 = vshrl.u32 %v205, 7
    %v207 = vsub.s32 0, %v206
    %v208 = vrot.slane %v203, %v207
    %v214 = vunpack.c.l.b16 %v199
    %v215 = vunpack.c.l.b16 %v200
    %v216 = vunpack.c.l.b16 %v201
    %v217 = vunpack.c.l.b16 %v202
    %v218 = vpack.c.b16 %v215, %v214
    %v219 = vpack.c.b16 %v217, %v216
    %v223 = vsel %vm92, %v198, 0
    %225 = vmatprep.subr.bf16.mxu0 0
    %226 = vmatpush1.bf16.msra.mxu0 %v218
    %227 = vmatprep.subr.bf16.mxu0 0
    %228 = vmatpush1.bf16.msra.mxu0 %v219
    %229 = vmatprep.subr.bf16.mxu0 0
    %230 = vmatpush1.bf16.msra.mxu0 0
    %231 = vmatprep.subr.bf16.mxu0 0
    %232 = vmatpush1.bf16.msra.mxu0 0
    %233 = vmatprep.subr.bf16.mxu0 0
    %234 = vmatpush1.bf16.msra.mxu0 0
    %235 = vmatprep.subr.bf16.mxu0 0
    %236 = vmatpush1.bf16.msra.mxu0 0
    %237 = vmatprep.subr.bf16.mxu0 0
    %238 = vmatpush1.bf16.msra.mxu0 0
    %239 = vmatprep.subr.bf16.mxu0 0
    %240 = vmatpush1.bf16.msra.mxu0 0
    %241 = vmatprep.subr.bf16.mxu0 0
    %242 = vmatpush1.bf16.msra.mxu0 0
    %243 = vmatprep.subr.bf16.mxu0 0
    %244 = vmatpush1.bf16.msra.mxu0 0
    %245 = vmatprep.subr.bf16.mxu0 0
    %246 = vmatpush1.bf16.msra.mxu0 0
    %247 = vmatprep.subr.bf16.mxu0 0
    %248 = vmatpush1.bf16.msra.mxu0 0
    %249 = vmatprep.subr.bf16.mxu0 0
    %250 = vmatpush1.bf16.msra.mxu0 0
    %251 = vmatprep.subr.bf16.mxu0 0
    %252 = vmatpush1.bf16.msra.mxu0 0
    %253 = vmatprep.subr.bf16.mxu0 0
    %254 = vmatpush1.bf16.msra.mxu0 0
    %255 = vmatprep.subr.bf16.mxu0 0
    %256 = vmatpush1.bf16.msra.mxu0 0
    %257 = vmatprep.mubr.bf16.mxu0 0
    %258 = vmatmul.mubr.bf16.gmra.mrb[0].mxu0 %v223
    %v259 = vpop.f32.mrb[0].mxu0
    %v260 = vadd.f32 %v208, %v259
    %v261 = vpop.f32.mrb[0].mxu0
    %v262 = vpop.f32.mrb[0].mxu0
    %v263 = vpop.f32.mrb[0].mxu0
    %264 = vdwg.mxu0
    %265 = vst [vmem:[#allocation8] sm:$0xff] %v260
    // Predicated region
    $region42: #{tpu_custom_call.1} parent=1 // pred_check
      _
    $region43: #{tpu_custom_call.1} parent=1 // pred_check_branch
      %267 = sbr.rel (0) target = $region45
    $region44: #{tpu_custom_call.1} parent=1 // pred_region
      %s269 = ssub.s32 128, 128
      %270 = vsyncadd [#allocation4], %s269
      %s272 = sshll.u32 [#allocation8], 4
      %s273 = int_to_ptr.vmem [resolvable:$true] %s272
      %275 = dma.vmem_to_hbm [thread:$0]  %s273, 128, %s7, [#allocation4]
    $region45: #{tpu_custom_call.1} parent=1 // pred_fallthru
      _
    // Predicated region
    $region46: #{tpu_custom_call.1} parent=1 // pred_check
      _
    $region47: #{tpu_custom_call.1} parent=1 // pred_check_branch
      %277 = sbr.rel (0) target = $region49
    $region48: #{tpu_custom_call.1} parent=1 // pred_region
      %278 = dma.done [#allocation4], 128
    $region49: #{tpu_custom_call.1} parent=1 // pred_fallthru
      _
    %279 = vsyncpa [#allocation3], 1
    %280 = vsyncpa [#allocation6], 1
    %281 = vsyncpa [#allocation4], 1

</llo_original>
